<compile_context>
chip_gen: v7x
topology: tpu7x:2x2x1
jax: 0.10.0
libtpu: 0.0.40
codegen_flags: <defaults>
</compile_context>

<pallas_src>
import math

import jax
import jax.numpy as jnp
from jax.experimental import pallas as pl
from jax.experimental.pallas import tpu as pltpu

_SUBLANE = 8


def _cross_stitch_kernel(x1_ref, x2_ref, wt_ref, o1_ref, o2_ref):
    e = x1_ref.shape[-1]
    # [TM, 2E] lane-concat (XLU), one fused K=2E, N=2E MXU matmul, f32 accumulate.
    x_cat = jnp.concatenate([x1_ref[...], x2_ref[...]], axis=-1)
    mixed = jnp.dot(x_cat, wt_ref[...], preferred_element_type=jnp.float32)
    # Split in-register into the two output tiles (stays within one 128-lane tile).
    o1_ref[...] = mixed[:, :e].astype(o1_ref.dtype)
    o2_ref[...] = mixed[:, e:].astype(o2_ref.dtype)


def prepare_cross_stitch_weight(weight):
    """One-time layout prep: torch nn.Linear [out, in] -> [in, out] so the kernel
    computes x_cat @ Wt.  Hoist / cache this outside the per-call path."""
    return jnp.asarray(weight).T


def _pick_row_tile(n, e, itemsize, block_rows):
    """Choose the row tile TM.

    - VMEM budget: 4 streamed arrays (x1, x2, o1, o2) double-buffered must stay
      well under v5e's 16 MiB default scoped VMEM.
    - If TM < N it must be a multiple of 8 sublanes; if TM == N (single block,
      block dim equals the full array dim) the divisibility rule is trivially
      satisfied.  Keep this invariant if the tiling is ever changed.
    - For moderate/large N keep at least 2 blocks so v7x's two TensorCores
      both get work via the "parallel" grid axis.
    """
    vmem_budget = 12 * 1024 * 1024
    bytes_per_row = 4 * e * itemsize
    max_tm = max(_SUBLANE, vmem_budget // (2 * bytes_per_row))
    tm_cap = max(_SUBLANE, (min(block_rows, max_tm) // _SUBLANE) * _SUBLANE)

    if n <= 256:
        # Tiny problem: one full block; per-step overhead dominates anyway.
        return n
    # Largest tile <= cap, but never fewer than 2 blocks.
    half = ((-(-n // 2)) + _SUBLANE - 1) // _SUBLANE * _SUBLANE
    return min(tm_cap, half)


def cross_stitch(input_1, input_2, wt, *, block_rows=8192):
    """CrossStitchUnit forward.

    input_1, input_2 : [N, E]
    wt               : [2E, 2E] pre-transposed weight (= torch weight.T; see
                       prepare_cross_stitch_weight)
    returns (out_1, out_2), each [N, E]
    """
    n, e = input_1.shape
    assert input_2.shape == (n, e)
    assert wt.shape == (2 * e, 2 * e)

    tm = _pick_row_tile(n, e, jnp.dtype(input_1.dtype).itemsize, block_rows)
    n_blocks = pl.cdiv(n, tm)

    row_spec = pl.BlockSpec((tm, e), lambda i: (i, 0))        # streamed over N
    w_spec = pl.BlockSpec((2 * e, 2 * e), lambda i: (0, 0))   # VMEM-resident

    out1, out2 = pl.pallas_call(
        _cross_stitch_kernel,
        out_shape=(jax.ShapeDtypeStruct((n, e), input_1.dtype),
                   jax.ShapeDtypeStruct((n, e), input_2.dtype)),
        grid_spec=pltpu.PrefetchScalarGridSpec(
            num_scalar_prefetch=0,
            grid=(n_blocks,),
            in_specs=[row_spec, row_spec, w_spec],
            out_specs=(row_spec, row_spec),
        ),
        compiler_params=pltpu.CompilerParams(
            dimension_semantics=("parallel",)),
    )(input_1, input_2, wt)
    return out1, out2


def _reference(input_1, input_2, weight):
    e = input_1.shape[-1]
    mixed = jnp.concatenate([input_1, input_2], axis=-1) @ weight.T
    return mixed[:, :e], mixed[:, e:]


if __name__ == "__main__":
    key = jax.random.PRNGKey(0)
    k1, k2, kw, k3, k4 = jax.random.split(key, 5)

    # Small shapes consistent with the module: batch=8, emb_size=32.
    N, E = 8, 32
    x1 = jax.random.normal(k1, (N, E), jnp.float32)
    x2 = jax.random.normal(k2, (N, E), jnp.float32)

    # Default torch nn.Linear init: U(-1/sqrt(fan_in), 1/sqrt(fan_in)), fan_in=2E.
    bound = 1.0 / math.sqrt(2 * E)
    weight = jax.random.uniform(kw, (2 * E, 2 * E), jnp.float32, -bound, bound)
    wt = prepare_cross_stitch_weight(weight)   # one-time layout prep

    o1, o2 = cross_stitch(x1, x2, wt)
    jax.block_until_ready((o1, o2))

    r1, r2 = _reference(x1, x2, weight)
    assert o1.shape == (N, E) and o2.shape == (N, E)
    assert jnp.allclose(o1, r1, atol=1e-5, rtol=1e-5)
    assert jnp.allclose(o2, r2, atol=1e-5, rtol=1e-5)

    # reset_parameters() case: identity weight => outputs equal inputs.
    wt_eye = prepare_cross_stitch_weight(jnp.eye(2 * E, dtype=jnp.float32))
    i1, i2 = cross_stitch(x1, x2, wt_eye)
    assert jnp.allclose(i1, x1, atol=1e-6)
    assert jnp.allclose(i2, x2, atol=1e-6)

    # Larger, non-divisible N: exercises the multi-block grid with a partial
    # last block (no padding / slicing in the wrapper).
    N2 = 300
    y1 = jax.random.normal(k3, (N2, E), jnp.float32)
    y2 = jax.random.normal(k4, (N2, E), jnp.float32)
    q1, q2 = _reference(y1, y2, weight)

    p1, p2 = cross_stitch(y1, y2, wt)                     # 2 blocks, partial last
    jax.block_until_ready((p1, p2))
    assert jnp.allclose(p1, q1, atol=1e-5, rtol=1e-5)
    assert jnp.allclose(p2, q2, atol=1e-5, rtol=1e-5)

    s1, s2 = cross_stitch(y1, y2, wt, block_rows=128)     # 3 blocks, partial last
    jax.block_until_ready((s1, s2))
    assert jnp.allclose(s1, q1, atol=1e-5, rtol=1e-5)
    assert jnp.allclose(s2, q2, atol=1e-5, rtol=1e-5)

    print("KERNEL_OK")
</pallas_src>

<mosaic_0001>
module attributes {stable_mosaic.version = 11 : i64} {
  func.func @_cross_stitch_kernel(%arg0: i32, %arg1: memref<8x32xf32, #tpu.memory_space<vmem>>, %arg2: memref<8x32xf32, #tpu.memory_space<vmem>>, %arg3: memref<64x64xf32, #tpu.memory_space<vmem>>, %arg4: memref<8x32xf32, #tpu.memory_space<vmem>>, %arg5: memref<8x32xf32, #tpu.memory_space<vmem>>) attributes {dimension_semantics = [#tpu.dimension_semantics<parallel>], iteration_bounds = array<i64: 1>, scalar_prefetch = 0 : i64, scratch_operands = 0 : i64, tpu.core_type = #tpu.core_type<tc>, window_params = [{transform_indices = @transform_0, window_bounds = array<i64: 8, 32>}, {transform_indices = @transform_1, window_bounds = array<i64: 8, 32>}, {pipeline_mode = #tpu.pipeline_mode<synchronous>, transform_indices = @transform_2, window_bounds = array<i64: 64, 64>}, {transform_indices = @transform_3, window_bounds = array<i64: 8, 32>}, {transform_indices = @transform_4, window_bounds = array<i64: 8, 32>}]} {
    %c0 = arith.constant 0 : index
    %c0_0 = arith.constant 0 : index
    %0 = vector.load %arg1[%c0, %c0_0] : memref<8x32xf32, #tpu.memory_space<vmem>>, vector<8x32xf32>
    %c0_1 = arith.constant 0 : index
    %c0_2 = arith.constant 0 : index
    %1 = vector.load %arg2[%c0_1, %c0_2] : memref<8x32xf32, #tpu.memory_space<vmem>>, vector<8x32xf32>
    %2 = tpu.concatenate %0, %1 in 1 : vector<8x32xf32>, vector<8x32xf32> -> vector<8x64xf32>
    %c0_3 = arith.constant 0 : index
    %c0_4 = arith.constant 0 : index
    %3 = vector.load %arg3[%c0_3, %c0_4] : memref<64x64xf32, #tpu.memory_space<vmem>>, vector<64x64xf32>
    %cst = arith.constant dense<0.000000e+00> : vector<8x64xf32>
    %4 = tpu.matmul %2, %3, %cst {dimension_numbers = #tpu.dot_dimension_numbers<[1], [0], [0], [1], [0, 0, 1, 1], [], []>} : vector<8x64xf32>, vector<64x64xf32>, vector<8x64xf32> -> vector<8x64xf32>
    %5 = vector.extract_strided_slice %4 {offsets = [0, 0], sizes = [8, 32], strides = [1, 1]} : vector<8x64xf32> to vector<8x32xf32>
    %c0_5 = arith.constant 0 : index
    %c0_6 = arith.constant 0 : index
    %6 = vector.load %arg4[%c0_5, %c0_6] : memref<8x32xf32, #tpu.memory_space<vmem>>, vector<8x32xf32>
    tpu.vector_store %arg4[%c0_5, %c0_6], %5 {strides = array<i32>} : memref<8x32xf32, #tpu.memory_space<vmem>>, vector<8x32xf32>,
    %7 = vector.extract_strided_slice %4 {offsets = [0, 32], sizes = [8, 32], strides = [1, 1]} : vector<8x64xf32> to vector<8x32xf32>
    %c0_7 = arith.constant 0 : index
    %c0_8 = arith.constant 0 : index
    %8 = vector.load %arg5[%c0_7, %c0_8] : memref<8x32xf32, #tpu.memory_space<vmem>>, vector<8x32xf32>
    tpu.vector_store %arg5[%c0_7, %c0_8], %7 {strides = array<i32>} : memref<8x32xf32, #tpu.memory_space<vmem>>, vector<8x32xf32>,
    return
  }
  func.func @transform_0(%arg0: i32) -> (i32, i32) {
    %c0_i32 = arith.constant 0 : i32
    %c0_i32_0 = arith.constant 0 : i32
    return %arg0, %c0_i32 : i32, i32
  }
  func.func @transform_1(%arg0: i32) -> (i32, i32) {
    %c0_i32 = arith.constant 0 : i32
    %c0_i32_0 = arith.constant 0 : i32
    return %arg0, %c0_i32 : i32, i32
  }
  func.func @transform_2(%arg0: i32) -> (i32, i32) {
    %c0_i32 = arith.constant 0 : i32
    %c0_i32_0 = arith.constant 0 : i32
    %c0_i32_1 = arith.constant 0 : i32
    return %c0_i32, %c0_i32_0 : i32, i32
  }
  func.func @transform_3(%arg0: i32) -> (i32, i32) {
    %c0_i32 = arith.constant 0 : i32
    %c0_i32_0 = arith.constant 0 : i32
    return %arg0, %c0_i32 : i32, i32
  }
  func.func @transform_4(%arg0: i32) -> (i32, i32) {
    %c0_i32 = arith.constant 0 : i32
    %c0_i32_0 = arith.constant 0 : i32
    return %arg0, %c0_i32 : i32, i32
  }
}

</mosaic_0001>

<llo_original>
// kernel: tpu_custom_call.1
$region0: #{tpu_custom_call.1}
  #allocation0 [shape = 'u32[]', space=smem, size = 0x4, offset = 0x4, fixed_abs, tag = 'smem constant byte address 0x4 - core index']
  #allocation1 [shape = 'u32[144,128]{1,0:T(1,128)}', space=vmem, size = 0x12000, scoped, tag = 'internal scratch']
  %s0 = inlined_call_operand.hbm [shape: f32[8,32], index: 0, kind: input, shape index: {}]
  %s1 = inlined_call_operand.hbm [shape: f32[8,32], index: 1, kind: input, shape index: {}]
  %s2 = inlined_call_operand.hbm [shape: f32[64,64], index: 2, kind: input, shape index: {}]
  %s3 = inlined_call_operand.hbm [shape: f32[8,32], index: 3, kind: output, shape index: {0}]
  %s4 = inlined_call_operand.hbm [shape: f32[8,32], index: 4, kind: output, shape index: {1}]
  %5 = xla_tuple %s3, %s4
  %s6 = sld [smem:[#allocation0]]
  $region42: #{tpu_custom_call.1} parent=0
    _
  %s8 = ssub.s32 1, %s6
  %s9 = scalar_select 0, %s8, %s6
  $region1: #{tpu_custom_call.1} parent=0
    #allocation2 [shape = 'u8[4096]{0}', space=vmem, size = 0x1000, scoped, tag = 'input window, operand 0, single buffered']
    #allocation3 [shape = 's32[1]{0}', space=sflag, size = 0x4, scoped, tag = 'scoped memory for tpu_custom_call.1']
    #allocation4 [shape = 's32[1]{0}', space=sflag, size = 0x4, scoped, tag = 'scoped memory for tpu_custom_call.1']
    #allocation5 [shape = 'u8[4096]{0}', space=vmem, size = 0x1000, scoped, tag = 'input window, operand 1, single buffered']
    #allocation6 [shape = 's32[1]{0}', space=sflag, size = 0x4, scoped, tag = 'scoped memory for tpu_custom_call.1']
    #allocation7 [shape = 'u8[32768]{0}', space=vmem, size = 0x8000, scoped, tag = 'input window, operand 2, single buffered']
    #allocation8 [shape = 'u8[4096]{0}', space=vmem, size = 0x1000, scoped, tag = 'output window, operand 0, single buffered']
    #allocation9 [shape = 'u8[4096]{0}', space=vmem, size = 0x1000, scoped, tag = 'output window, operand 1, single buffered']
    #allocation10 [shape = 's32[1]{0}', space=sflag, size = 0x4, scoped, tag = 'scoped memory for tpu_custom_call.1']
    %10 = vsyncpa [#allocation3], 0
    %11 = vsyncpa [#allocation6], 0
    %12 = vsyncpa [#allocation4], 0
    %13 = vsyncpa [#allocation10], 0
    // Predicated region
    $region2: #{tpu_custom_call.1} parent=1 // pred_check
      _
    $region3: #{tpu_custom_call.1} parent=1 // pred_check_branch
      %15 = sbr.rel (0) target = $region5
    $region4: #{tpu_custom_call.1} parent=1 // pred_region
      %s17 = ssub.s32 128, 128
      %18 = vsyncadd [#allocation3], %s17
      %s20 = sshll.u32 [#allocation2], 4
      %s21 = int_to_ptr.vmem [resolvable:$true] %s20
      %23 = dma.hbm_to_vmem [thread:$0]  %s0, 128, %s21, [#allocation3]
    $region5: #{tpu_custom_call.1} parent=1 // pred_fallthru
      _
    // Predicated region
    $region6: #{tpu_custom_call.1} parent=1 // pred_check
      _
    $region7: #{tpu_custom_call.1} parent=1 // pred_check_branch
      %25 = sbr.rel (0) target = $region9
    $region8: #{tpu_custom_call.1} parent=1 // pred_region
      %s27 = ssub.s32 128, 128
      %28 = vsyncadd [#allocation6], %s27
      %s30 = sshll.u32 [#allocation5], 4
      %s31 = int_to_ptr.vmem [resolvable:$true] %s30
      %33 = dma.hbm_to_vmem [thread:$0]  %s1, 128, %s31, [#allocation6]
    $region9: #{tpu_custom_call.1} parent=1 // pred_fallthru
      _
    // Predicated region
    $region10: #{tpu_custom_call.1} parent=1 // pred_check
      _
    $region11: #{tpu_custom_call.1} parent=1 // pred_check_branch
      %35 = sbr.rel (0) target = $region13
    $region12: #{tpu_custom_call.1} parent=1 // pred_region
      %s37 = ssub.s32 1024, 1024
      %38 = vsyncadd [#allocation6], %s37
      %s39 = sshll.u32 [#allocation7], 4
      %s40 = int_to_ptr.vmem [resolvable:$true] %s39
      %45 = dma.hbm_to_vmem [thread:$0]  %s2, 1024, %s40, [#allocation6], 128, 128, 8
    $region13: #{tpu_custom_call.1} parent=1 // pred_fallthru
      _
    // Predicated region
    $region14: #{tpu_custom_call.1} parent=1 // pred_check
      _
    $region15: #{tpu_custom_call.1} parent=1 // pred_check_branch
      %47 = sbr.rel (0) target = $region17
    $region16: #{tpu_custom_call.1} parent=1 // pred_region
      %48 = dma.done [#allocation3], 128
    $region17: #{tpu_custom_call.1} parent=1 // pred_fallthru
      _
    // Predicated region
    $region18: #{tpu_custom_call.1} parent=1 // pred_check
      _
    $region19: #{tpu_custom_call.1} parent=1 // pred_check_branch
      %50 = sbr.rel (0) target = $region21
    $region20: #{tpu_custom_call.1} parent=1 // pred_region
      %51 = dma.done [#allocation6], 128
    $region21: #{tpu_custom_call.1} parent=1 // pred_fallthru
      _
    // Predicated region
    $region22: #{tpu_custom_call.1} parent=1 // pred_check
      _
    $region23: #{tpu_custom_call.1} parent=1 // pred_check_branch
      %53 = sbr.rel (0) target = $region25
    $region24: #{tpu_custom_call.1} parent=1 // pred_region
      %54 = dma.done [#allocation6], 1024
    $region25: #{tpu_custom_call.1} parent=1 // pred_fallthru
      _
    %v55 = vld [vmem:[#allocation2] sm:$0xff]
    %v56 = vld [vmem:[#allocation5] sm:$0xff]
    %58 = vrot.lane.b32.xlu0 %v56, 32
    %v59 = vpop.permute.xlu0 %58
    %vm61 = vcmask 261120
    %v62 = vsel %vm61, %v55, %v59
    %v63 = vld [vmem:[#allocation7] sm:$0xff]
    %v64 = vld [vmem:[#allocation7 + $0x8] sm:$0xff]
    %v65 = vld [vmem:[#allocation7 + $0x10] sm:$0xff]
    %v66 = vld [vmem:[#allocation7 + $0x18] sm:$0xff]
    %v67 = vld [vmem:[#allocation7 + $0x20] sm:$0xff]
    %v68 = vld [vmem:[#allocation7 + $0x28] sm:$0xff]
    %v69 = vld [vmem:[#allocation7 + $0x30] sm:$0xff]
    %v70 = vld [vmem:[#allocation7 + $0x38] sm:$0xff]
    %vm71 = vcmask 523264
    %v73 = vsel %vm71, %v62, 0
    %75 = vmatprep.subr.mxu0 0.0
    %76 = vmatpush1.msra.mxu0 %v63
    %77 = vmatprep.subr.mxu0 0.0
    %78 = vmatpush1.msra.mxu0 %v64
    %79 = vmatprep.subr.mxu0 0.0
    %80 = vmatpush1.msra.mxu0 %v65
    %81 = vmatprep.subr.mxu0 0.0
    %82 = vmatpush1.msra.mxu0 %v66
    %83 = vmatprep.subr.mxu0 0.0
    %84 = vmatpush1.msra.mxu0 %v67
    %85 = vmatprep.subr.mxu0 0.0
    %86 = vmatpush1.msra.mxu0 %v68
    %87 = vmatprep.subr.mxu0 0.0
    %88 = vmatpush1.msra.mxu0 %v69
    %89 = vmatprep.subr.mxu0 0.0
    %90 = vmatpush1.msra.mxu0 %v70
    %91 = vmatprep.subr.mxu0 0.0
    %92 = vmatpush1.msra.mxu0 0.0
    %93 = vmatprep.subr.mxu0 0.0
    %94 = vmatpush1.msra.mxu0 0.0
    %95 = vmatprep.subr.mxu0 0.0
    %96 = vmatpush1.msra.mxu0 0.0
    %97 = vmatprep.subr.mxu0 0.0
    %98 = vmatpush1.msra.mxu0 0.0
    %99 = vmatprep.subr.mxu0 0.0
    %100 = vmatpush1.msra.mxu0 0.0
    %101 = vmatprep.subr.mxu0 0.0
    %102 = vmatpush1.msra.mxu0 0.0
    %103 = vmatprep.subr.mxu0 0.0
    %104 = vmatpush1.msra.mxu0 0.0
    %105 = vmatprep.subr.mxu0 0.0
    %106 = vmatpush1.msra.mxu0 0.0
    %107 = vmatprep.subr.mxu0 0.0
    %108 = vmatpush1.msra.mxu0 0.0
    %109 = vmatprep.subr.mxu0 0.0
    %110 = vmatpush1.msra.mxu0 0.0
    %111 = vmatprep.subr.mxu0 0.0
    %112 = vmatpush1.msra.mxu0 0.0
    %113 = vmatprep.subr.mxu0 0.0
    %114 = vmatpush1.msra.mxu0 0.0
    %115 = vmatprep.subr.mxu0 0.0
    %116 = vmatpush1.msra.mxu0 0.0
    %117 = vmatprep.subr.mxu0 0.0
    %118 = vmatpush1.msra.mxu0 0.0
    %119 = vmatprep.subr.mxu0 0.0
    %120 = vmatpush1.msra.mxu0 0.0
    %121 = vmatprep.subr.mxu0 0.0
    %122 = vmatpush1.msra.mxu0 0.0
    %123 = vmatprep.subr.mxu0 0.0
    %124 = vmatpush1.msra.mxu0 0.0
    %125 = vmatprep.subr.mxu0 0.0
    %126 = vmatpush1.msra.mxu0 0.0
    %127 = vmatprep.subr.mxu0 0.0
    %128 = vmatpush1.msra.mxu0 0.0
    %129 = vmatprep.subr.mxu0 0.0
    %130 = vmatpush1.msra.mxu0 0.0
    %131 = vmatprep.subr.mxu0 0.0
    %132 = vmatpush1.msra.mxu0 0.0
    %133 = vmatprep.subr.mxu0 0.0
    %134 = vmatpush1.msra.mxu0 0.0
    %135 = vmatprep.subr.mxu0 0.0
    %136 = vmatpush1.msra.mxu0 0.0
    %137 = vmatprep.subr.mxu0 0.0
    %138 = vmatpush1.msra.mxu0 0.0
    %139 = vmatprep.mubr.f32.mxu0 0.0
    %140 = vmatmul.mubr.f32.gmra.mrb[0].mxu0 %v73
    %v141 = vpop.f32.mrb[0].mxu0
    %v142 = vadd.f32 0.0, %v141
    %v143 = vpop.f32.mrb[0].mxu0
    %144 = vdwg.mxu0
    %145 = vst.msk [vmem:[#allocation8] sm:$0xff] %vm61, %v142
    %147 = vrot.lane.b32.xlu0 %v142, 96
    %v148 = vpop.permute.xlu0 %147
    %150 = vst.msk [vmem:[#allocation9] sm:$0xff] %vm61, %v148
    // Predicated region
    $region26: #{tpu_custom_call.1} parent=1 // pred_check
      _
    $region27: #{tpu_custom_call.1} parent=1 // pred_check_branch
      %152 = sbr.rel (0) target = $region29
    $region28: #{tpu_custom_call.1} parent=1 // pred_region
      %s154 = ssub.s32 128, 128
      %155 = vsyncadd [#allocation4], %s154
      %s157 = sshll.u32 [#allocation8], 4
      %s158 = int_to_ptr.vmem [resolvable:$true] %s157
      %160 = dma.vmem_to_hbm [thread:$0]  %s158, 128, %s3, [#allocation4]
    $region29: #{tpu_custom_call.1} parent=1 // pred_fallthru
      _
    // Predicated region
    $region30: #{tpu_custom_call.1} parent=1 // pred_check
      _
    $region31: #{tpu_custom_call.1} parent=1 // pred_check_branch
      %162 = sbr.rel (0) target = $region33
    $region32: #{tpu_custom_call.1} parent=1 // pred_region
      %s164 = ssub.s32 128, 128
      %165 = vsyncadd [#allocation10], %s164
      %s167 = sshll.u32 [#allocation9], 4
      %s168 = int_to_ptr.vmem [resolvable:$true] %s167
      %170 = dma.vmem_to_hbm [thread:$0]  %s168, 128, %s4, [#allocation10]
    $region33: #{tpu_custom_call.1} parent=1 // pred_fallthru
      _
    // Predicated region
    $region34: #{tpu_custom_call.1} parent=1 // pred_check
      _
    $region35: #{tpu_custom_call.1} parent=1 // pred_check_branch
      %172 = sbr.rel (0) target = $region37
    $region36: #{tpu_custom_call.1} parent=1 // pred_region
      %173 = dma.done [#allocation4], 128
    $region37: #{tpu_custom_call.1} parent=1 // pred_fallthru
      _
    // Predicated region
    $region38: #{tpu_custom_call.1} parent=1 // pred_check
      _
    $region39: #{tpu_custom_call.1} parent=1 // pred_check_branch
      %175 = sbr.rel (0) target = $region41
    $region40: #{tpu_custom_call.1} parent=1 // pred_region
      %176 = dma.done [#allocation10], 128
    $region41: #{tpu_custom_call.1} parent=1 // pred_fallthru
      _
    %177 = vsyncpa [#allocation3], 1
    %178 = vsyncpa [#allocation6], 1
    %179 = vsyncpa [#allocation4], 1
    %180 = vsyncpa [#allocation10], 1

</llo_original>
